<compile_context>
chip_gen: v7x
topology: tpu7x:2x2x1
jax: 0.10.0
libtpu: 0.0.40
codegen_flags: <defaults>
</compile_context>

<pallas_src>
import functools
import math

import jax
import jax.numpy as jnp
from jax.experimental import pallas as pl
from jax.experimental.pallas import tpu as pltpu

_TARGET_BLOCK_BYTES = 2 * 1024 * 1024      # ~2 MiB per in/out block
_VMEM_LIMIT_BYTES = 32 * 1024 * 1024       # explicit, safe on v5e/v6e/v7x


def _use_approx_recip(dtype) -> bool:
    # EUP vrcp relative error is below bf16/f16 output precision but visible
    # in f32, so only use the approximate path for narrow outputs.
    return jnp.dtype(dtype).itemsize < 4


def _softmax_lastaxis_kernel(x_ref, o_ref):
    # x_ref/o_ref: (TILE_ROWS, C); numerically stable softmax over the lane axis.
    x = x_ref[...].astype(jnp.float32)
    m = jnp.max(x, axis=-1, keepdims=True)
    e = jnp.exp(x - m)
    s = jnp.sum(e, axis=-1, keepdims=True)
    inv = pl.reciprocal(s, approx=_use_approx_recip(o_ref.dtype))
    o_ref[...] = (e * inv).astype(o_ref.dtype)


def _softmax_axis1_kernel(x_ref, o_ref):
    # x_ref/o_ref: (PRE_TILE, C, POST_TILE); softmax over axis 1 (sublane axis),
    # keeping the large `post` dim lane-dense.
    x = x_ref[...].astype(jnp.float32)
    m = jnp.max(x, axis=1, keepdims=True)
    e = jnp.exp(x - m)
    s = jnp.sum(e, axis=1, keepdims=True)
    inv = pl.reciprocal(s, approx=_use_approx_recip(o_ref.dtype))
    o_ref[...] = (e * inv).astype(o_ref.dtype)


def _softmax_lastaxis_2d(x2d: jnp.ndarray) -> jnp.ndarray:
    rows, c = x2d.shape
    row_bytes = c * x2d.dtype.itemsize
    if rows * row_bytes <= _TARGET_BLOCK_BYTES:
        tile_rows = rows                       # full extent -> always legal
    else:
        tile_rows = max(8, (_TARGET_BLOCK_BYTES // row_bytes) // 8 * 8)
    grid = (pl.cdiv(rows, tile_rows),)         # ragged last block: OOB stores dropped
    return pl.pallas_call(
        _softmax_lastaxis_kernel,
        out_shape=jax.ShapeDtypeStruct((rows, c), x2d.dtype),
        grid_spec=pltpu.PrefetchScalarGridSpec(
            num_scalar_prefetch=0,
            grid=grid,
            in_specs=[pl.BlockSpec((tile_rows, c), lambda i: (i, 0))],
            out_specs=pl.BlockSpec((tile_rows, c), lambda i: (i, 0)),
        ),
        compiler_params=pltpu.CompilerParams(
            dimension_semantics=("parallel",),
            vmem_limit_bytes=_VMEM_LIMIT_BYTES,
        ),
    )(x2d)


def _softmax_axis1_3d(x3d: jnp.ndarray) -> jnp.ndarray:
    pre, c, post = x3d.shape
    col_bytes = c * x3d.dtype.itemsize         # bytes per lane column per pre-slice
    # Lane (post) tile: multiple of 128 (or full extent), sized toward the target.
    if post * col_bytes <= _TARGET_BLOCK_BYTES:
        post_tile = post
    else:
        post_tile = max(128, (_TARGET_BLOCK_BYTES // col_bytes) // 128 * 128)
        post_tile = min(post_tile, post)
    # If post alone does not fill the target, grow the leading (pre) tile too.
    block_bytes = post_tile * col_bytes
    pre_tile = 1
    if post_tile == post and block_bytes < _TARGET_BLOCK_BYTES:
        pre_tile = int(min(pre, max(1, _TARGET_BLOCK_BYTES // block_bytes)))
    grid = (pl.cdiv(pre, pre_tile), pl.cdiv(post, post_tile))
    return pl.pallas_call(
        _softmax_axis1_kernel,
        out_shape=jax.ShapeDtypeStruct((pre, c, post), x3d.dtype),
        grid_spec=pltpu.PrefetchScalarGridSpec(
            num_scalar_prefetch=0,
            grid=grid,
            in_specs=[pl.BlockSpec((pre_tile, c, post_tile),
                                   lambda i, j: (i, 0, j))],
            out_specs=pl.BlockSpec((pre_tile, c, post_tile),
                                   lambda i, j: (i, 0, j)),
        ),
        compiler_params=pltpu.CompilerParams(
            dimension_semantics=("parallel", "parallel"),
            vmem_limit_bytes=_VMEM_LIMIT_BYTES,
        ),
    )(x3d)


@functools.partial(jax.jit, static_argnames=("dim",))
def my_softmax(x: jnp.ndarray, dim: int = 1) -> jnp.ndarray:
    """Equivalent of MySoftmax(dim).forward(x): softmax along `dim`."""
    ndim = x.ndim
    axis = dim % ndim
    shape = x.shape
    pre = math.prod(shape[:axis]) if axis > 0 else 1
    c = shape[axis]
    post = math.prod(shape[axis + 1:]) if axis < ndim - 1 else 1

    if post == 1:
        # Softmax axis is already the trailing (lane) axis -> plain row softmax.
        out2d = _softmax_lastaxis_2d(x.reshape(pre, c))
        return out2d.reshape(shape)

    # Keep the large contiguous trailing dims on lanes; reduce over `c` in-kernel.
    # For extremely large softmax dims (c * 128 * itemsize approaching VMEM) an
    # online running-max/sum split of `c` would be needed; not required here.
    out3d = _softmax_axis1_3d(x.reshape(pre, c, post))
    return out3d.reshape(shape)


if __name__ == "__main__":
    key = jax.random.PRNGKey(0)
    # NCHW input, softmax over channel dim (dim=1), matching MySoftmax default.
    x = jax.random.normal(key, (2, 4, 16, 16), dtype=jnp.float32)

    out = my_softmax(x, dim=1)
    out = jax.block_until_ready(out)

    # Sanity check against pure-JAX reference.
    ref = jax.nn.softmax(x, axis=1)
    assert out.shape == x.shape and out.dtype == x.dtype
    assert jnp.allclose(out, ref, atol=1e-6, rtol=1e-6)
    assert jnp.allclose(jnp.sum(out, axis=1), 1.0, atol=1e-5)

    # Also exercise the trailing-axis path (dim=-1).
    x2 = jax.random.normal(jax.random.PRNGKey(1), (2, 8, 32), dtype=jnp.float32)
    out2 = jax.block_until_ready(my_softmax(x2, dim=-1))
    assert jnp.allclose(out2, jax.nn.softmax(x2, axis=-1), atol=1e-6, rtol=1e-6)

    print("KERNEL_OK")
</pallas_src>

<mosaic_0001>
module attributes {stable_mosaic.version = 11 : i64} {
  func.func @_softmax_axis1_kernel(%arg0: i32, %arg1: i32, %arg2: memref<2x4x256xf32, #tpu.memory_space<vmem>>, %arg3: memref<2x4x256xf32, #tpu.memory_space<vmem>>) attributes {dimension_semantics = [#tpu.dimension_semantics<parallel>, #tpu.dimension_semantics<parallel>], iteration_bounds = array<i64: 1, 1>, scalar_prefetch = 0 : i64, scratch_operands = 0 : i64, tpu.core_type = #tpu.core_type<tc>, window_params = [{transform_indices = @transform_0, window_bounds = array<i64: 2, 4, 256>}, {transform_indices = @transform_1, window_bounds = array<i64: 2, 4, 256>}]} {
    %c0 = arith.constant 0 : index
    %c0_0 = arith.constant 0 : index
    %c0_1 = arith.constant 0 : index
    %0 = vector.load %arg2[%c0, %c0_0, %c0_1] : memref<2x4x256xf32, #tpu.memory_space<vmem>>, vector<2x4x256xf32>
    %cst = arith.constant dense<0xFF800000> : vector<2x256xf32>
    %1 = vector.multi_reduction <maximumf>, %0, %cst [1] : vector<2x4x256xf32> to vector<2x256xf32>
    %2 = vector.shape_cast %1 : vector<2x256xf32> to vector<2x1x256xf32>
    %3 = vector.broadcast %2 : vector<2x1x256xf32> to vector<2x4x256xf32>
    %4 = arith.subf %0, %3 : vector<2x4x256xf32>
    %5 = math.exp %4 : vector<2x4x256xf32>
    %cst_2 = arith.constant dense<0.000000e+00> : vector<2x256xf32>
    %6 = vector.multi_reduction <add>, %5, %cst_2 [1] : vector<2x4x256xf32> to vector<2x256xf32>
    %7 = vector.shape_cast %6 : vector<2x256xf32> to vector<2x1x256xf32>
    %8 = tpu.reciprocal %7 : vector<2x1x256xf32> -> vector<2x1x256xf32>
    %9 = vector.broadcast %8 : vector<2x1x256xf32> to vector<2x4x256xf32>
    %10 = arith.mulf %5, %9 : vector<2x4x256xf32>
    %c0_3 = arith.constant 0 : index
    %c0_4 = arith.constant 0 : index
    %c0_5 = arith.constant 0 : index
    %11 = vector.load %arg3[%c0_3, %c0_4, %c0_5] : memref<2x4x256xf32, #tpu.memory_space<vmem>>, vector<2x4x256xf32>
    tpu.vector_store %arg3[%c0_3, %c0_4, %c0_5], %10 {strides = array<i32>} : memref<2x4x256xf32, #tpu.memory_space<vmem>>, vector<2x4x256xf32>,
    return
  }
  func.func @transform_0(%arg0: i32, %arg1: i32) -> (i32, i32, i32) {
    %c0_i32 = arith.constant 0 : i32
    %c0_i32_0 = arith.constant 0 : i32
    return %arg0, %c0_i32, %arg1 : i32, i32, i32
  }
  func.func @transform_1(%arg0: i32, %arg1: i32) -> (i32, i32, i32) {
    %c0_i32 = arith.constant 0 : i32
    %c0_i32_0 = arith.constant 0 : i32
    return %arg0, %c0_i32, %arg1 : i32, i32, i32
  }
}

</mosaic_0001>

<llo_original>
// kernel: my_softmax.1
$region0: #{my_softmax.1}
  #allocation0 [shape = 'u32[]', space=smem, size = 0x4, offset = 0x4, fixed_abs, tag = 'smem constant byte address 0x4 - core index']
  #allocation1 [shape = 'u32[144,128]{1,0:T(1,128)}', space=vmem, size = 0x12000, scoped, tag = 'internal scratch']
  %s0 = inlined_call_operand.vmem [shape: f32[2,4,256], index: 0, kind: input, shape index: {}]
  %s1 = inlined_call_operand.vmem [shape: f32[2,4,256], index: 1, kind: output, shape index: {}]
  %s2 = sld [smem:[#allocation0]]
  $region14: #{my_softmax.1} parent=0
    _
  %s4 = ssub.s32 1, %s2
  %s5 = scalar_select 0, %s4, %s2
  // Predicated region
  $region2: #{my_softmax.1} parent=0 // pred_check
    _
  $region3: #{my_softmax.1} parent=0 // pred_check_branch
    %7 = sbr.rel (0) target = $region5
  $region4: #{my_softmax.1} parent=0 // pred_region
    _
  $region5: #{my_softmax.1} parent=0 // pred_fallthru
    _
  %v8 = vld [vmem:[%s0] sm:$0xff]
  %v9 = vld [vmem:[%s0 + $0x8] sm:$0xff]
  %v12 = vcombine.high %v8, %v8
  %v13 = vcombine.high %v9, %v9
  %vm16 = vcmask 1043456
  %v17 = vsel %vm16, %v8, -inf
  %v18 = vrot.slane %v17, 4
  %v19 = vmax.f32 %v17, %v18
  %v20 = vrot.slane %v19, 2
  %v21 = vmax.f32 %v19, %v20
  %v22 = vrot.slane %v21, 1
  %v23 = vmax.f32 %v21, %v22
  %v24 = vsel %vm16, %v12, -inf
  %v25 = vrot.slane %v24, 4
  %v26 = vmax.f32 %v24, %v25
  %v27 = vrot.slane %v26, 2
  %v28 = vmax.f32 %v26, %v27
  %v29 = vrot.slane %v28, 1
  %v30 = vmax.f32 %v28, %v29
  %v31 = vsel %vm16, %v9, -inf
  %v32 = vrot.slane %v31, 4
  %v33 = vmax.f32 %v31, %v32
  %v34 = vrot.slane %v33, 2
  %v35 = vmax.f32 %v33, %v34
  %v36 = vrot.slane %v35, 1
  %v37 = vmax.f32 %v35, %v36
  %v38 = vsel %vm16, %v13, -inf
  %v39 = vrot.slane %v38, 4
  %v40 = vmax.f32 %v38, %v39
  %v41 = vrot.slane %v40, 2
  %v42 = vmax.f32 %v40, %v41
  %v43 = vrot.slane %v42, 1
  %v44 = vmax.f32 %v42, %v43
  %v49 = vcombine.low %v23, %v30
  %v50 = vcombine.low %v37, %v44
  %v53 = vsub.f32 %v8, %v49
  %v54 = vsub.f32 %v9, %v50
  %v55 = vmul.f32 %v53, 1.442695
  %v56 = vpow.pop %v55
  %v57 = vmul.f32 %v54, 1.442695
  %v58 = vpow.pop %v57
  %v61 = vcombine.high %v56, %v56
  %v62 = vcombine.high %v58, %v58
  %v65 = vsel %vm16, %v56, 0.0
  %v66 = vrot.slane %v65, 4
  %v67 = vadd.f32 %v65, %v66
  %v68 = vrot.slane %v67, 2
  %v69 = vadd.f32 %v67, %v68
  %v70 = vrot.slane %v69, 1
  %v71 = vadd.f32 %v69, %v70
  %v72 = vsel %vm16, %v61, 0.0
  %v73 = vrot.slane %v72, 4
  %v74 = vadd.f32 %v72, %v73
  %v75 = vrot.slane %v74, 2
  %v76 = vadd.f32 %v74, %v75
  %v77 = vrot.slane %v76, 1
  %v78 = vadd.f32 %v76, %v77
  %v79 = vsel %vm16, %v58, 0.0
  %v80 = vrot.slane %v79, 4
  %v81 = vadd.f32 %v79, %v80
  %v82 = vrot.slane %v81, 2
  %v83 = vadd.f32 %v81, %v82
  %v84 = vrot.slane %v83, 1
  %v85 = vadd.f32 %v83, %v84
  %v86 = vsel %vm16, %v62, 0.0
  %v87 = vrot.slane %v86, 4
  %v88 = vadd.f32 %v86, %v87
  %v89 = vrot.slane %v88, 2
  %v90 = vadd.f32 %v88, %v89
  %v91 = vrot.slane %v90, 1
  %v92 = vadd.f32 %v90, %v91
  %v93 = vrcp.pop %v71
  %v94 = vrcp.pop %v78
  %v95 = vrcp.pop %v85
  %v96 = vrcp.pop %v92
  %v101 = vcombine.low %v93, %v94
  %v102 = vcombine.low %v95, %v96
  %v105 = vmul.f32 %v56, %v101
  %v106 = vmul.f32 %v58, %v102
  %107 = vst [vmem:[%s1] sm:$0xff] %v105
  %108 = vst [vmem:[%s1 + $0x8] sm:$0xff] %v106
  // Predicated region
  $region6: #{my_softmax.1} parent=0 // pred_check
    _
  $region7: #{my_softmax.1} parent=0 // pred_check_branch
    %110 = sbr.rel (0) target = $region9
  $region8: #{my_softmax.1} parent=0 // pred_region
    _
  $region9: #{my_softmax.1} parent=0 // pred_fallthru
    _
  // Predicated region
  $region10: #{my_softmax.1} parent=0 // pred_check
    _
  $region11: #{my_softmax.1} parent=0 // pred_check_branch
    %112 = sbr.rel (0) target = $region13
  $region12: #{my_softmax.1} parent=0 // pred_region
    _
  $region13: #{my_softmax.1} parent=0 // pred_fallthru
    _

</llo_original>
